<compile_context>
chip_gen: v7x
topology: tpu7x:2x2x1
jax: 0.10.0
libtpu: 0.0.40
codegen_flags: <defaults>
</compile_context>

<pallas_src>
import jax
import jax.numpy as jnp
from jax.experimental import pallas as pl
from jax.experimental.pallas import tpu as pltpu


def _leaky_relu(y, negative_slope=0.2):
    # max(y, a*y) == LeakyReLU(a) for 0 < a < 1  (one vmul + one vmax on the VPU).
    return jnp.maximum(y, negative_slope * y)


def style_mapper_kernel(x_ref, w1_ref, b1_ref, w2_ref, b2_ref, w3_ref, b3_ref, o_ref):
    """Fused (Linear -> LeakyReLU(0.2)) x 3 on one batch tile.

    MXU operands keep their native (possibly bf16) dtype; accumulation and the
    bias/activation epilogue are f32.
    """
    h = x_ref[...]

    def layer(h, w_ref, b_ref):
        y = jnp.dot(h, w_ref[...], preferred_element_type=jnp.float32)
        y = y + b_ref[...]                 # bias (1, D), f32, broadcasts over rows
        y = _leaky_relu(y, 0.2)
        return y.astype(w_ref.dtype)       # back to compute dtype for the next matmul

    h = layer(h, w1_ref, b1_ref)
    h = layer(h, w2_ref, b2_ref)
    # Last layer: keep the f32 epilogue result, cast straight to the output dtype.
    y = jnp.dot(h, w3_ref[...], preferred_element_type=jnp.float32)
    y = _leaky_relu(y + b3_ref[...], 0.2)
    o_ref[...] = y.astype(o_ref.dtype)


def _round_up(x, m):
    return ((x + m - 1) // m) * m


def _choose_tile_b(batch, target=512):
    """Batch tile: multiple of 8 (sublane), <= target rows, grid >= 2 when possible."""
    b8 = _round_up(batch, 8)
    n_tiles = pl.cdiv(b8, target)
    if n_tiles == 1 and b8 >= 16:
        n_tiles = 2  # give the pipeline / v7x megacore something to split
    return _round_up(pl.cdiv(b8, n_tiles), 8)


def prepare_style_mapper_params(params, compute_dtype=jnp.float32):
    """One-time parameter prep (call once at load time, NOT per forward).

    params: list of (W, b) with W of shape (out, in) and b of (out,), as in
    torch.nn.Linear.  Returns (W1^T, b1, W2^T, b2, W3^T, b3) with W^T in
    (in, out) layout cast to compute_dtype and biases kept in f32 (1, out)
    for the f32 epilogue.
    """
    assert len(params) == 3, "StyleMapper default depth=3"
    flat = []
    for (w, b) in params:
        flat.append(jnp.asarray(w, dtype=compute_dtype).T)          # (in, out)
        flat.append(jnp.asarray(b, dtype=jnp.float32).reshape(1, -1))
    return tuple(flat)


def style_mapper_forward(x, prepared_params, *, tile_b=None):
    """x: (B, D).  prepared_params: output of prepare_style_mapper_params."""
    B, D = x.shape
    w1, b1, w2, b2, w3, b3 = prepared_params
    assert w1.shape == (D, D) and b1.shape == (1, D)
    compute_dtype = w1.dtype
    out_dtype = x.dtype

    if tile_b is None:
        tile_b = _choose_tile_b(B)
    tile_b = max(8, _round_up(int(tile_b), 8))
    tile_b = min(tile_b, _round_up(B, 8))
    padded_B = _round_up(B, tile_b)
    grid = (padded_B // tile_b,)

    xk = x.astype(compute_dtype)
    if padded_B != B:
        xk = jnp.pad(xk, ((0, padded_B - B), (0, 0)))  # ragged batch: pad, slice back

    x_spec = pl.BlockSpec((tile_b, D), lambda i: (i, 0))
    w_spec = pl.BlockSpec((D, D), lambda i: (0, 0))    # resident (constant index map)
    b_spec = pl.BlockSpec((1, D), lambda i: (0, 0))
    o_spec = pl.BlockSpec((tile_b, D), lambda i: (i, 0))

    # VMEM budget: 2x-buffered resident weights/biases + double-buffered in/out
    # tiles + compiler slack.  Keeps us honest on v5e (16 MiB scoped default)
    # and v7x (64 MiB physical).
    c_bytes = jnp.dtype(compute_dtype).itemsize
    o_bytes = jnp.dtype(out_dtype).itemsize
    weights_bytes = 3 * D * D * c_bytes + 3 * D * 4
    tile_bytes = tile_b * D * (c_bytes + o_bytes)
    vmem_limit = int(min(2 * weights_bytes + 2 * tile_bytes + (8 << 20), 64 << 20))

    out = pl.pallas_call(
        style_mapper_kernel,
        out_shape=jax.ShapeDtypeStruct((padded_B, D), out_dtype),
        grid_spec=pltpu.PrefetchScalarGridSpec(
            num_scalar_prefetch=0,
            grid=grid,
            in_specs=[x_spec,
                      w_spec, b_spec,
                      w_spec, b_spec,
                      w_spec, b_spec],
            out_specs=o_spec,
        ),
        compiler_params=pltpu.CompilerParams(
            dimension_semantics=("parallel",),
            vmem_limit_bytes=vmem_limit,
        ),
    )(xk, w1, b1, w2, b2, w3, b3)

    return out[:B] if padded_B != B else out


def reference_forward(x, params):
    """Pure-JAX reference mirroring the PyTorch module (f32 math)."""
    h = jnp.asarray(x, jnp.float32)
    for (w, b) in params:
        h = h @ jnp.asarray(w, jnp.float32).T + jnp.asarray(b, jnp.float32)
        h = jnp.maximum(h, 0.2 * h)
    return h.astype(x.dtype)


if __name__ == "__main__":
    # Small deterministic shapes consistent with the module: latent_dim=256, depth=3.
    latent_dim, depth, batch = 256, 3, 8

    key = jax.random.PRNGKey(0)
    keys = jax.random.split(key, 2 * depth + 1)

    # Deterministic init (Kaiming-uniform-ish bounds, like nn.Linear defaults).
    params = []
    bound = 1.0 / float(jnp.sqrt(latent_dim))
    for layer_idx in range(depth):
        wk, bk = keys[2 * layer_idx], keys[2 * layer_idx + 1]
        W = jax.random.uniform(wk, (latent_dim, latent_dim),
                               minval=-bound, maxval=bound, dtype=jnp.float32)
        b = jax.random.uniform(bk, (latent_dim,),
                               minval=-bound, maxval=bound, dtype=jnp.float32)
        params.append((W, b))

    x = jax.random.normal(keys[-1], (batch, latent_dim), dtype=jnp.float32)
    ref = reference_forward(x, params)

    # 1) f32 path (matches PyTorch semantics up to accumulation order).
    prepped_f32 = prepare_style_mapper_params(params, compute_dtype=jnp.float32)
    out = jax.block_until_ready(style_mapper_forward(x, prepped_f32))
    assert out.shape == (batch, latent_dim)
    assert jnp.allclose(out, ref, atol=1e-4, rtol=1e-4), "f32 mismatch vs reference"

    # 2) Tiled + ragged batch path (exercises the grid, padding, and pipelining).
    big_B = 300  # not a multiple of the tile -> padded internally, sliced back
    xb = jax.random.normal(jax.random.PRNGKey(1), (big_B, latent_dim), dtype=jnp.float32)
    out_b = jax.block_until_ready(style_mapper_forward(xb, prepped_f32, tile_b=128))
    ref_b = reference_forward(xb, params)
    assert out_b.shape == (big_B, latent_dim)
    assert jnp.allclose(out_b, ref_b, atol=1e-4, rtol=1e-4), "tiled mismatch vs reference"

    # 3) bf16-operand path: bf16 x/W on the MXU, f32 accumulate + f32 epilogue.
    prepped_bf16 = prepare_style_mapper_params(params, compute_dtype=jnp.bfloat16)
    out_h = jax.block_until_ready(style_mapper_forward(x, prepped_bf16))
    assert out_h.shape == (batch, latent_dim)
    assert jnp.allclose(out_h.astype(jnp.float32), ref, atol=5e-2, rtol=5e-2), \
        "bf16 mismatch vs reference"

    print("KERNEL_OK")
</pallas_src>

<mosaic_0001>
module attributes {stable_mosaic.version = 11 : i64} {
  func.func @style_mapper_kernel(%arg0: i32, %arg1: memref<8x256xf32, #tpu.memory_space<vmem>>, %arg2: memref<256x256xf32, #tpu.memory_space<vmem>>, %arg3: memref<1x256xf32, #tpu.memory_space<vmem>>, %arg4: memref<256x256xf32, #tpu.memory_space<vmem>>, %arg5: memref<1x256xf32, #tpu.memory_space<vmem>>, %arg6: memref<256x256xf32, #tpu.memory_space<vmem>>, %arg7: memref<1x256xf32, #tpu.memory_space<vmem>>, %arg8: memref<8x256xf32, #tpu.memory_space<vmem>>) attributes {dimension_semantics = [#tpu.dimension_semantics<parallel>], iteration_bounds = array<i64: 1>, scalar_prefetch = 0 : i64, scratch_operands = 0 : i64, tpu.core_type = #tpu.core_type<tc>, window_params = [{transform_indices = @transform_0, window_bounds = array<i64: 8, 256>}, {pipeline_mode = #tpu.pipeline_mode<synchronous>, transform_indices = @transform_1, window_bounds = array<i64: 256, 256>}, {pipeline_mode = #tpu.pipeline_mode<synchronous>, transform_indices = @transform_2, window_bounds = array<i64: 1, 256>}, {pipeline_mode = #tpu.pipeline_mode<synchronous>, transform_indices = @transform_3, window_bounds = array<i64: 256, 256>}, {pipeline_mode = #tpu.pipeline_mode<synchronous>, transform_indices = @transform_4, window_bounds = array<i64: 1, 256>}, {pipeline_mode = #tpu.pipeline_mode<synchronous>, transform_indices = @transform_5, window_bounds = array<i64: 256, 256>}, {pipeline_mode = #tpu.pipeline_mode<synchronous>, transform_indices = @transform_6, window_bounds = array<i64: 1, 256>}, {transform_indices = @transform_7, window_bounds = array<i64: 8, 256>}]} {
    %c0 = arith.constant 0 : index
    %c0_0 = arith.constant 0 : index
    %0 = vector.load %arg1[%c0, %c0_0] : memref<8x256xf32, #tpu.memory_space<vmem>>, vector<8x256xf32>
    %c0_1 = arith.constant 0 : index
    %c0_2 = arith.constant 0 : index
    %1 = vector.load %arg2[%c0_1, %c0_2] : memref<256x256xf32, #tpu.memory_space<vmem>>, vector<256x256xf32>
    %cst = arith.constant dense<0.000000e+00> : vector<8x256xf32>
    %2 = tpu.matmul %0, %1, %cst {dimension_numbers = #tpu.dot_dimension_numbers<[1], [0], [0], [1], [0, 0, 1, 1], [], []>} : vector<8x256xf32>, vector<256x256xf32>, vector<8x256xf32> -> vector<8x256xf32>
    %c0_3 = arith.constant 0 : index
    %c0_4 = arith.constant 0 : index
    %3 = vector.load %arg3[%c0_3, %c0_4] : memref<1x256xf32, #tpu.memory_space<vmem>>, vector<1x256xf32>
    %4 = vector.broadcast %3 : vector<1x256xf32> to vector<8x256xf32>
    %5 = arith.addf %2, %4 : vector<8x256xf32>
    %cst_5 = arith.constant 2.000000e-01 : f32
    %6 = vector.broadcast %cst_5 : f32 to vector<8x256xf32>
    %7 = arith.mulf %6, %5 : vector<8x256xf32>
    %8 = arith.maximumf %5, %7 : vector<8x256xf32>
    %c0_6 = arith.constant 0 : index
    %c0_7 = arith.constant 0 : index
    %9 = vector.load %arg4[%c0_6, %c0_7] : memref<256x256xf32, #tpu.memory_space<vmem>>, vector<256x256xf32>
    %cst_8 = arith.constant dense<0.000000e+00> : vector<8x256xf32>
    %10 = tpu.matmul %8, %9, %cst_8 {dimension_numbers = #tpu.dot_dimension_numbers<[1], [0], [0], [1], [0, 0, 1, 1], [], []>} : vector<8x256xf32>, vector<256x256xf32>, vector<8x256xf32> -> vector<8x256xf32>
    %c0_9 = arith.constant 0 : index
    %c0_10 = arith.constant 0 : index
    %11 = vector.load %arg5[%c0_9, %c0_10] : memref<1x256xf32, #tpu.memory_space<vmem>>, vector<1x256xf32>
    %12 = vector.broadcast %11 : vector<1x256xf32> to vector<8x256xf32>
    %13 = arith.addf %10, %12 : vector<8x256xf32>
    %cst_11 = arith.constant 2.000000e-01 : f32
    %14 = vector.broadcast %cst_11 : f32 to vector<8x256xf32>
    %15 = arith.mulf %14, %13 : vector<8x256xf32>
    %16 = arith.maximumf %13, %15 : vector<8x256xf32>
    %c0_12 = arith.constant 0 : index
    %c0_13 = arith.constant 0 : index
    %17 = vector.load %arg6[%c0_12, %c0_13] : memref<256x256xf32, #tpu.memory_space<vmem>>, vector<256x256xf32>
    %cst_14 = arith.constant dense<0.000000e+00> : vector<8x256xf32>
    %18 = tpu.matmul %16, %17, %cst_14 {dimension_numbers = #tpu.dot_dimension_numbers<[1], [0], [0], [1], [0, 0, 1, 1], [], []>} : vector<8x256xf32>, vector<256x256xf32>, vector<8x256xf32> -> vector<8x256xf32>
    %c0_15 = arith.constant 0 : index
    %c0_16 = arith.constant 0 : index
    %19 = vector.load %arg7[%c0_15, %c0_16] : memref<1x256xf32, #tpu.memory_space<vmem>>, vector<1x256xf32>
    %20 = vector.broadcast %19 : vector<1x256xf32> to vector<8x256xf32>
    %21 = arith.addf %18, %20 : vector<8x256xf32>
    %cst_17 = arith.constant 2.000000e-01 : f32
    %22 = vector.broadcast %cst_17 : f32 to vector<8x256xf32>
    %23 = arith.mulf %22, %21 : vector<8x256xf32>
    %24 = arith.maximumf %21, %23 : vector<8x256xf32>
    %c0_18 = arith.constant 0 : index
    %c0_19 = arith.constant 0 : index
    %25 = vector.load %arg8[%c0_18, %c0_19] : memref<8x256xf32, #tpu.memory_space<vmem>>, vector<8x256xf32>
    tpu.vector_store %arg8[%c0_18, %c0_19], %24 {strides = array<i32>} : memref<8x256xf32, #tpu.memory_space<vmem>>, vector<8x256xf32>,
    return
  }
  func.func @transform_0(%arg0: i32) -> (i32, i32) {
    %c0_i32 = arith.constant 0 : i32
    %c0_i32_0 = arith.constant 0 : i32
    return %arg0, %c0_i32 : i32, i32
  }
  func.func @transform_1(%arg0: i32) -> (i32, i32) {
    %c0_i32 = arith.constant 0 : i32
    %c0_i32_0 = arith.constant 0 : i32
    %c0_i32_1 = arith.constant 0 : i32
    return %c0_i32, %c0_i32_0 : i32, i32
  }
  func.func @transform_2(%arg0: i32) -> (i32, i32) {
    %c0_i32 = arith.constant 0 : i32
    %c0_i32_0 = arith.constant 0 : i32
    %c0_i32_1 = arith.constant 0 : i32
    return %c0_i32, %c0_i32_0 : i32, i32
  }
  func.func @transform_3(%arg0: i32) -> (i32, i32) {
    %c0_i32 = arith.constant 0 : i32
    %c0_i32_0 = arith.constant 0 : i32
    %c0_i32_1 = arith.constant 0 : i32
    return %c0_i32, %c0_i32_0 : i32, i32
  }
  func.func @transform_4(%arg0: i32) -> (i32, i32) {
    %c0_i32 = arith.constant 0 : i32
    %c0_i32_0 = arith.constant 0 : i32
    %c0_i32_1 = arith.constant 0 : i32
    return %c0_i32, %c0_i32_0 : i32, i32
  }
  func.func @transform_5(%arg0: i32) -> (i32, i32) {
    %c0_i32 = arith.constant 0 : i32
    %c0_i32_0 = arith.constant 0 : i32
    %c0_i32_1 = arith.constant 0 : i32
    return %c0_i32, %c0_i32_0 : i32, i32
  }
  func.func @transform_6(%arg0: i32) -> (i32, i32) {
    %c0_i32 = arith.constant 0 : i32
    %c0_i32_0 = arith.constant 0 : i32
    %c0_i32_1 = arith.constant 0 : i32
    return %c0_i32, %c0_i32_0 : i32, i32
  }
  func.func @transform_7(%arg0: i32) -> (i32, i32) {
    %c0_i32 = arith.constant 0 : i32
    %c0_i32_0 = arith.constant 0 : i32
    return %arg0, %c0_i32 : i32, i32
  }
}

</mosaic_0001>

<llo_original>
// kernel: tpu_custom_call.1
$region0: #{tpu_custom_call.1}
  #allocation0 [shape = 'u32[]', space=smem, size = 0x4, offset = 0x4, fixed_abs, tag = 'smem constant byte address 0x4 - core index']
  #allocation1 [shape = 'u32[144,128]{1,0:T(1,128)}', space=vmem, size = 0x12000, scoped, tag = 'internal scratch']
  %s0 = inlined_call_operand.hbm [shape: f32[8,256], index: 0, kind: input, shape index: {}]
  %s1 = inlined_call_operand.hbm [shape: f32[256,256], index: 1, kind: input, shape index: {}]
  %s2 = inlined_call_operand.vmem [shape: f32[1,256], index: 2, kind: input, shape index: {}]
  %s3 = inlined_call_operand.hbm [shape: f32[256,256], index: 3, kind: input, shape index: {}]
  %s4 = inlined_call_operand.vmem [shape: f32[1,256], index: 4, kind: input, shape index: {}]
  %s5 = inlined_call_operand.hbm [shape: f32[256,256], index: 5, kind: input, shape index: {}]
  %s6 = inlined_call_operand.vmem [shape: f32[1,256], index: 6, kind: input, shape index: {}]
  %s7 = inlined_call_operand.hbm [shape: f32[8,256], index: 7, kind: output, shape index: {}]
  %s8 = sld [smem:[#allocation0]]
  $region54: #{tpu_custom_call.1} parent=0
    _
  %s10 = ssub.s32 1, %s8
  %s11 = scalar_select 0, %s10, %s8
  $region1: #{tpu_custom_call.1} parent=0
    #allocation2 [shape = 'u8[8192]{0}', space=vmem, size = 0x2000, scoped, tag = 'input window, operand 0, single buffered']
    #allocation3 [shape = 's32[1]{0}', space=sflag, size = 0x4, scoped, tag = 'scoped memory for tpu_custom_call.1']
    #allocation4 [shape = 's32[1]{0}', space=sflag, size = 0x4, scoped, tag = 'scoped memory for tpu_custom_call.1']
    #allocation5 [shape = 'u8[262144]{0}', space=vmem, size = 0x40000, scoped, tag = 'input window, operand 1, single buffered']
    #allocation6 [shape = 's32[1]{0}', space=sflag, size = 0x4, scoped, tag = 'scoped memory for tpu_custom_call.1']
    #allocation7 [shape = 'u8[262144]{0}', space=vmem, size = 0x40000, scoped, tag = 'input window, operand 3, single buffered']
    #allocation8 [shape = 'u8[262144]{0}', space=vmem, size = 0x40000, scoped, tag = 'input window, operand 5, single buffered']
    #allocation9 [shape = 's32[1]{0}', space=sflag, size = 0x4, scoped, tag = 'scoped memory for tpu_custom_call.1']
    #allocation10 [shape = 'u8[8192]{0}', space=vmem, size = 0x2000, scoped, tag = 'output window, operand 0, single buffered']
    %12 = vsyncpa [#allocation3], 0
    %13 = vsyncpa [#allocation6], 0
    %14 = vsyncpa [#allocation9], 0
    %15 = vsyncpa [#allocation4], 0
    // Predicated region
    $region2: #{tpu_custom_call.1} parent=1 // pred_check
      _
    $region3: #{tpu_custom_call.1} parent=1 // pred_check_branch
      %17 = sbr.rel (0) target = $region5
    $region4: #{tpu_custom_call.1} parent=1 // pred_region
      %s19 = ssub.s32 256, 256
      %20 = vsyncadd [#allocation3], %s19
      %s22 = sshll.u32 [#allocation2], 4
      %s23 = int_to_ptr.vmem [resolvable:$true] %s22
      %25 = dma.hbm_to_vmem [thread:$0]  %s0, 256, %s23, [#allocation3]
    $region5: #{tpu_custom_call.1} parent=1 // pred_fallthru
      _
    // Predicated region
    $region6: #{tpu_custom_call.1} parent=1 // pred_check
      _
    $region7: #{tpu_custom_call.1} parent=1 // pred_check_branch
      %27 = sbr.rel (0) target = $region9
    $region8: #{tpu_custom_call.1} parent=1 // pred_region
      %s29 = ssub.s32 8192, 8192
      %30 = vsyncadd [#allocation6], %s29
      %s31 = sshll.u32 [#allocation5], 4
      %s32 = int_to_ptr.vmem [resolvable:$true] %s31
      %37 = dma.hbm_to_vmem [thread:$0]  %s1, 8192, %s32, [#allocation6], 256, 256, 16
    $region9: #{tpu_custom_call.1} parent=1 // pred_fallthru
      _
    // Predicated region
    $region10: #{tpu_custom_call.1} parent=1 // pred_check
      _
    $region11: #{tpu_custom_call.1} parent=1 // pred_check_branch
      %39 = sbr.rel (0) target = $region13
    $region12: #{tpu_custom_call.1} parent=1 // pred_region
      _
    $region13: #{tpu_custom_call.1} parent=1 // pred_fallthru
      _
    // Predicated region
    $region14: #{tpu_custom_call.1} parent=1 // pred_check
      _
    $region15: #{tpu_custom_call.1} parent=1 // pred_check_branch
      %41 = sbr.rel (0) target = $region17
    $region16: #{tpu_custom_call.1} parent=1 // pred_region
      %s43 = ssub.s32 8192, 8192
      %44 = vsyncadd [#allocation6], %s43
      %s45 = sshll.u32 [#allocation7], 4
      %s46 = int_to_ptr.vmem [resolvable:$true] %s45
      %51 = dma.hbm_to_vmem [thread:$0]  %s3, 8192, %s46, [#allocation6], 256, 256, 16
    $region17: #{tpu_custom_call.1} parent=1 // pred_fallthru
      _
    // Predicated region
    $region18: #{tpu_custom_call.1} parent=1 // pred_check
      _
    $region19: #{tpu_custom_call.1} parent=1 // pred_check_branch
      %53 = sbr.rel (0) target = $region21
    $region20: #{tpu_custom_call.1} parent=1 // pred_region
      _
    $region21: #{tpu_custom_call.1} parent=1 // pred_fallthru
      _
    // Predicated region
    $region22: #{tpu_custom_call.1} parent=1 // pred_check
      _
    $region23: #{tpu_custom_call.1} parent=1 // pred_check_branch
      %55 = sbr.rel (0) target = $region25
    $region24: #{tpu_custom_call.1} parent=1 // pred_region
      %s57 = ssub.s32 8192, 8192
      %58 = vsyncadd [#allocation9], %s57
      %s59 = sshll.u32 [#allocation8], 4
      %s60 = int_to_ptr.vmem [resolvable:$true] %s59
      %65 = dma.hbm_to_vmem [thread:$0]  %s5, 8192, %s60, [#allocation9], 256, 256, 16
    $region25: #{tpu_custom_call.1} parent=1 // pred_fallthru
      _
    // Predicated region
    $region26: #{tpu_custom_call.1} parent=1 // pred_check
      _
    $region27: #{tpu_custom_call.1} parent=1 // pred_check_branch
      %67 = sbr.rel (0) target = $region29
    $region28: #{tpu_custom_call.1} parent=1 // pred_region
      _
    $region29: #{tpu_custom_call.1} parent=1 // pred_fallthru
      _
    // Predicated region
    $region30: #{tpu_custom_call.1} parent=1 // pred_check
      _
    $region31: #{tpu_custom_call.1} parent=1 // pred_check_branch
      %69 = sbr.rel (0) target = $region33
    $region32: #{tpu_custom_call.1} parent=1 // pred_region
      %70 = dma.done [#allocation3], 256
    $region33: #{tpu_custom_call.1} parent=1 // pred_fallthru
      _
    // Predicated region
    $region34: #{tpu_custom_call.1} parent=1 // pred_check
      _
    $region35: #{tpu_custom_call.1} parent=1 // pred_check_branch
      %72 = sbr.rel (0) target = $region37
    $region36: #{tpu_custom_call.1} parent=1 // pred_region
      %73 = dma.done [#allocation6], 8192
    $region37: #{tpu_custom_call.1} parent=1 // pred_fallthru
      _
    // Predicated region
    $region38: #{tpu_custom_call.1} parent=1 // pred_check
      _
    $region39: #{tpu_custom_call.1} parent=1 // pred_check_branch
      %75 = sbr.rel (0) target = $region41
    $region40: #{tpu_custom_call.1} parent=1 // pred_region
      %76 = dma.done [#allocation6], 8192
    $region41: #{tpu_custom_call.1} parent=1 // pred_fallthru
      _
    // Predicated region
    $region42: #{tpu_custom_call.1} parent=1 // pred_check
      _
    $region43: #{tpu_custom_call.1} parent=1 // pred_check_branch
      %78 = sbr.rel (0) target = $region45
    $region44: #{tpu_custom_call.1} parent=1 // pred_region
      %79 = dma.done [#allocation9], 8192
    $region45: #{tpu_custom_call.1} parent=1 // pred_fallthru
      _
    %v80 = vld [vmem:[#allocation2] sm:$0xff]
    %v81 = vld [vmem:[#allocation2 + $0x8] sm:$0xff]
    %v82 = vld [vmem:[#allocation5] sm:$0xff]
    %v83 = vld [vmem:[#allocation5 + $0x8] sm:$0xff]
    %v84 = vld [vmem:[#allocation5 + $0x10] sm:$0xff]
    %v85 = vld [vmem:[#allocation5 + $0x18] sm:$0xff]
    %v86 = vld [vmem:[#allocation5 + $0x20] sm:$0xff]
    %v87 = vld [vmem:[#allocation5 + $0x28] sm:$0xff]
    %v88 = vld [vmem:[#allocation5 + $0x30] sm:$0xff]
    %v89 = vld [vmem:[#allocation5 + $0x38] sm:$0xff]
    %v90 = vld [vmem:[#allocation5 + $0x40] sm:$0xff]
    %v91 = vld [vmem:[#allocation5 + $0x48] sm:$0xff]
    %v92 = vld [vmem:[#allocation5 + $0x50] sm:$0xff]
    %v93 = vld [vmem:[#allocation5 + $0x58] sm:$0xff]
    %v94 = vld [vmem:[#allocation5 + $0x60] sm:$0xff]
    %v95 = vld [vmem:[#allocation5 + $0x68] sm:$0xff]
    %v96 = vld [vmem:[#allocation5 + $0x70] sm:$0xff]
    %v97 = vld [vmem:[#allocation5 + $0x78] sm:$0xff]
    %v98 = vld [vmem:[#allocation5 + $0x80] sm:$0xff]
    %v99 = vld [vmem:[#allocation5 + $0x88] sm:$0xff]
    %v100 = vld [vmem:[#allocation5 + $0x90] sm:$0xff]
    %v101 = vld [vmem:[#allocation5 + $0x98] sm:$0xff]
    %v102 = vld [vmem:[#allocation5 + $0xa0] sm:$0xff]
    %v103 = vld [vmem:[#allocation5 + $0xa8] sm:$0xff]
    %v104 = vld [vmem:[#allocation5 + $0xb0] sm:$0xff]
    %v105 = vld [vmem:[#allocation5 + $0xb8] sm:$0xff]
    %v106 = vld [vmem:[#allocation5 + $0xc0] sm:$0xff]
    %v107 = vld [vmem:[#allocation5 + $0xc8] sm:$0xff]
    %v108 = vld [vmem:[#allocation5 + $0xd0] sm:$0xff]
    %v109 = vld [vmem:[#allocation5 + $0xd8] sm:$0xff]
    %v110 = vld [vmem:[#allocation5 + $0xe0] sm:$0xff]
    %v111 = vld [vmem:[#allocation5 + $0xe8] sm:$0xff]
    %v112 = vld [vmem:[#allocation5 + $0xf0] sm:$0xff]
    %v113 = vld [vmem:[#allocation5 + $0xf8] sm:$0xff]
    %v114 = vld [vmem:[#allocation5 + $0x100] sm:$0xff]
    %v115 = vld [vmem:[#allocation5 + $0x108] sm:$0xff]
    %v116 = vld [vmem:[#allocation5 + $0x110] sm:$0xff]
    %v117 = vld [vmem:[#allocation5 + $0x118] sm:$0xff]
    %v118 = vld [vmem:[#allocation5 + $0x120] sm:$0xff]
    %v119 = vld [vmem:[#allocation5 + $0x128] sm:$0xff]
    %v120 = vld [vmem:[#allocation5 + $0x130] sm:$0xff]
    %v121 = vld [vmem:[#allocation5 + $0x138] sm:$0xff]
    %v122 = vld [vmem:[#allocation5 + $0x140] sm:$0xff]
    %v123 = vld [vmem:[#allocation5 + $0x148] sm:$0xff]
    %v124 = vld [vmem:[#allocation5 + $0x150] sm:$0xff]
    %v125 = vld [vmem:[#allocation5 + $0x158] sm:$0xff]
    %v126 = vld [vmem:[#allocation5 + $0x160] sm:$0xff]
    %v127 = vld [vmem:[#allocation5 + $0x168] sm:$0xff]
    %v128 = vld [vmem:[#allocation5 + $0x170] sm:$0xff]
    %v129 = vld [vmem:[#allocation5 + $0x178] sm:$0xff]
    %v130 = vld [vmem:[#allocation5 + $0x180] sm:$0xff]
    %v131 = vld [vmem:[#allocation5 + $0x188] sm:$0xff]
    %v132 = vld [vmem:[#allocation5 + $0x190] sm:$0xff]
    %v133 = vld [vmem:[#allocation5 + $0x198] sm:$0xff]
    %v134 = vld [vmem:[#allocation5 + $0x1a0] sm:$0xff]
    %v135 = vld [vmem:[#allocation5 + $0x1a8] sm:$0xff]
    %v136 = vld [vmem:[#allocation5 + $0x1b0] sm:$0xff]
    %v137 = vld [vmem:[#allocation5 + $0x1b8] sm:$0xff]
    %v138 = vld [vmem:[#allocation5 + $0x1c0] sm:$0xff]
    %v139 = vld [vmem:[#allocation5 + $0x1c8] sm:$0xff]
    %v140 = vld [vmem:[#allocation5 + $0x1d0] sm:$0xff]
    %v141 = vld [vmem:[#allocation5 + $0x1d8] sm:$0xff]
    %v142 = vld [vmem:[#allocation5 + $0x1e0] sm:$0xff]
    %v143 = vld [vmem:[#allocation5 + $0x1e8] sm:$0xff]
    %v144 = vld [vmem:[#allocation5 + $0x1f0] sm:$0xff]
    %v145 = vld [vmem:[#allocation5 + $0x1f8] sm:$0xff]
    %v146 = vld [vmem:[%s2] sm:$0x3]
    %v148 = vlaneseq
    %v149 = vshrl.u32 %v148, 7
    %v150 = vsub.s32 0, %v149
    %v151 = vrot.slane %v146, %v150
    %v152 = vlaneseq
    %v153 = vshrl.u32 %v152, 7
    %v154 = vsub.s32 1, %v153
    %v155 = vrot.slane %v146, %v154
    %158 = vmatprep.subr.mxu0 %v83
    %159 = vmatpush1.msra.mxu0 %v82
    %160 = vmatprep.subr.mxu0 %v85
    %161 = vmatpush1.msra.mxu0 %v84
    %162 = vmatprep.subr.mxu0 %v87
    %163 = vmatpush1.msra.mxu0 %v86
    %164 = vmatprep.subr.mxu0 %v89
    %165 = vmatpush1.msra.mxu0 %v88
    %166 = vmatprep.subr.mxu0 %v91
    %167 = vmatpush1.msra.mxu0 %v90
    %168 = vmatprep.subr.mxu0 %v93
    %169 = vmatpush1.msra.mxu0 %v92
    %170 = vmatprep.subr.mxu0 %v95
    %171 = vmatpush1.msra.mxu0 %v94
    %172 = vmatprep.subr.mxu0 %v97
    %173 = vmatpush1.msra.mxu0 %v96
    %174 = vmatprep.subr.mxu0 %v99
    %175 = vmatpush1.msra.mxu0 %v98
    %176 = vmatprep.subr.mxu0 %v101
    %177 = vmatpush1.msra.mxu0 %v100
    %178 = vmatprep.subr.mxu0 %v103
    %179 = vmatpush1.msra.mxu0 %v102
    %180 = vmatprep.subr.mxu0 %v105
    %181 = vmatpush1.msra.mxu0 %v104
    %182 = vmatprep.subr.mxu0 %v107
    %183 = vmatpush1.msra.mxu0 %v106
    %184 = vmatprep.subr.mxu0 %v109
    %185 = vmatpush1.msra.mxu0 %v108
    %186 = vmatprep.subr.mxu0 %v111
    %187 = vmatpush1.msra.mxu0 %v110
    %188 = vmatprep.subr.mxu0 %v113
    %189 = vmatpush1.msra.mxu0 %v112
    %190 = vmatprep.subr.mxu0 %v115
    %191 = vmatpush1.msra.mxu0 %v114
    %192 = vmatprep.subr.mxu0 %v117
    %193 = vmatpush1.msra.mxu0 %v116
    %194 = vmatprep.subr.mxu0 %v119
    %195 = vmatpush1.msra.mxu0 %v118
    %196 = vmatprep.subr.mxu0 %v121
    %197 = vmatpush1.msra.mxu0 %v120
    %198 = vmatprep.subr.mxu0 %v123
    %199 = vmatpush1.msra.mxu0 %v122
    %200 = vmatprep.subr.mxu0 %v125
    %201 = vmatpush1.msra.mxu0 %v124
    %202 = vmatprep.subr.mxu0 %v127
    %203 = vmatpush1.msra.mxu0 %v126
    %204 = vmatprep.subr.mxu0 %v129
    %205 = vmatpush1.msra.mxu0 %v128
    %206 = vmatprep.subr.mxu0 %v131
    %207 = vmatpush1.msra.mxu0 %v130
    %208 = vmatprep.subr.mxu0 %v133
    %209 = vmatpush1.msra.mxu0 %v132
    %210 = vmatprep.subr.mxu0 %v135
    %211 = vmatpush1.msra.mxu0 %v134
    %212 = vmatprep.subr.mxu0 %v137
    %213 = vmatpush1.msra.mxu0 %v136
    %214 = vmatprep.subr.mxu0 %v139
    %215 = vmatpush1.msra.mxu0 %v138
    %216 = vmatprep.subr.mxu0 %v141
    %217 = vmatpush1.msra.mxu0 %v140
    %218 = vmatprep.subr.mxu0 %v143
    %219 = vmatpush1.msra.mxu0 %v142
    %220 = vmatprep.subr.mxu0 %v145
    %221 = vmatpush1.msra.mxu0 %v144
    %222 = vmatprep.mubr.f32.mxu0 %v81
    %223 = vmatmul.mubr.f32.gmra.mrb[0].mxu0 %v80
    %v224 = vpop.f32.mrb[0].mxu0
    %v225 = vadd.f32 %v151, %v224
    %v226 = vpop.f32.mrb[0].mxu0
    %v227 = vadd.f32 %v155, %v226
    %228 = vdwg.mxu0
    %v229 = vmul.f32 %v225, 0.2
    %v230 = vmul.f32 %v227, 0.2
    %v231 = vmax.f32 %v225, %v229
    %v232 = vmax.f32 %v227, %v230
    %v233 = vld [vmem:[#allocation7] sm:$0xff]
    %v234 = vld [vmem:[#allocation7 + $0x8] sm:$0xff]
    %v235 = vld [vmem:[#allocation7 + $0x10] sm:$0xff]
    %v236 = vld [vmem:[#allocation7 + $0x18] sm:$0xff]
    %v237 = vld [vmem:[#allocation7 + $0x20] sm:$0xff]
    %v238 = vld [vmem:[#allocation7 + $0x28] sm:$0xff]
    %v239 = vld [vmem:[#allocation7 + $0x30] sm:$0xff]
    %v240 = vld [vmem:[#allocation7 + $0x38] sm:$0xff]
    %v241 = vld [vmem:[#allocation7 + $0x40] sm:$0xff]
    %v242 = vld [vmem:[#allocation7 + $0x48] sm:$0xff]
    %v243 = vld [vmem:[#allocation7 + $0x50] sm:$0xff]
    %v244 = vld [vmem:[#allocation7 + $0x58] sm:$0xff]
    %v245 = vld [vmem:[#allocation7 + $0x60] sm:$0xff]
    %v246 = vld [vmem:[#allocation7 + $0x68] sm:$0xff]
    %v247 = vld [vmem:[#allocation7 + $0x70] sm:$0xff]
    %v248 = vld [vmem:[#allocation7 + $0x78] sm:$0xff]
    %v249 = vld [vmem:[#allocation7 + $0x80] sm:$0xff]
    %v250 = vld [vmem:[#allocation7 + $0x88] sm:$0xff]
    %v251 = vld [vmem:[#allocation7 + $0x90] sm:$0xff]
    %v252 = vld [vmem:[#allocation7 + $0x98] sm:$0xff]
    %v253 = vld [vmem:[#allocation7 + $0xa0] sm:$0xff]
    %v254 = vld [vmem:[#allocation7 + $0xa8] sm:$0xff]
    %v255 = vld [vmem:[#allocation7 + $0xb0] sm:$0xff]
    %v256 = vld [vmem:[#allocation7 + $0xb8] sm:$0xff]
    %v257 = vld [vmem:[#allocation7 + $0xc0] sm:$0xff]
    %v258 = vld [vmem:[#allocation7 + $0xc8] sm:$0xff]
    %v259 = vld [vmem:[#allocation7 + $0xd0] sm:$0xff]
    %v260 = vld [vmem:[#allocation7 + $0xd8] sm:$0xff]
    %v261 = vld [vmem:[#allocation7 + $0xe0] sm:$0xff]
    %v262 = vld [vmem:[#allocation7 + $0xe8] sm:$0xff]
    %v263 = vld [vmem:[#allocation7 + $0xf0] sm:$0xff]
    %v264 = vld [vmem:[#allocation7 + $0xf8] sm:$0xff]
    %v265 = vld [vmem:[#allocation7 + $0x100] sm:$0xff]
    %v266 = vld [vmem:[#allocation7 + $0x108] sm:$0xff]
    %v267 = vld [vmem:[#allocation7 + $0x110] sm:$0xff]
    %v268 = vld [vmem:[#allocation7 + $0x118] sm:$0xff]
    %v269 = vld [vmem:[#allocation7 + $0x120] sm:$0xff]
    %v270 = vld [vmem:[#allocation7 + $0x128] sm:$0xff]
    %v271 = vld [vmem:[#allocation7 + $0x130] sm:$0xff]
    %v272 = vld [vmem:[#allocation7 + $0x138] sm:$0xff]
    %v273 = vld [vmem:[#allocation7 + $0x140] sm:$0xff]
    %v274 = vld [vmem:[#allocation7 + $0x148] sm:$0xff]
    %v275 = vld [vmem:[#allocation7 + $0x150] sm:$0xff]
    %v276 = vld [vmem:[#allocation7 + $0x158] sm:$0xff]
    %v277 = vld [vmem:[#allocation7 + $0x160] sm:$0xff]
    %v278 = vld [vmem:[#allocation7 + $0x168] sm:$0xff]
    %v279 = vld [vmem:[#allocation7 + $0x170] sm:$0xff]
    %v280 = vld [vmem:[#allocation7 + $0x178] sm:$0xff]
    %v281 = vld [vmem:[#allocation7 + $0x180] sm:$0xff]
    %v282 = vld [vmem:[#allocation7 + $0x188] sm:$0xff]
    %v283 = vld [vmem:[#allocation7 + $0x190] sm:$0xff]
    %v284 = vld [vmem:[#allocation7 + $0x198] sm:$0xff]
    %v285 = vld [vmem:[#allocation7 + $0x1a0] sm:$0xff]
    %v286 = vld [vmem:[#allocation7 + $0x1a8] sm:$0xff]
    %v287 = vld [vmem:[#allocation7 + $0x1b0] sm:$0xff]
    %v288 = vld [vmem:[#allocation7 + $0x1b8] sm:$0xff]
    %v289 = vld [vmem:[#allocation7 + $0x1c0] sm:$0xff]
    %v290 = vld [vmem:[#allocation7 + $0x1c8] sm:$0xff]
    %v291 = vld [vmem:[#allocation7 + $0x1d0] sm:$0xff]
    %v292 = vld [vmem:[#allocation7 + $0x1d8] sm:$0xff]
    %v293 = vld [vmem:[#allocation7 + $0x1e0] sm:$0xff]
    %v294 = vld [vmem:[#allocation7 + $0x1e8] sm:$0xff]
    %v295 = vld [vmem:[#allocation7 + $0x1f0] sm:$0xff]
    %v296 = vld [vmem:[#allocation7 + $0x1f8] sm:$0xff]
    %v297 = vld [vmem:[%s4] sm:$0x3]
    %v299 = vlaneseq
    %v300 = vshrl.u32 %v299, 7
    %v301 = vsub.s32 0, %v300
    %v302 = vrot.slane %v297, %v301
    %v303 = vlaneseq
    %v304 = vshrl.u32 %v303, 7
    %v305 = vsub.s32 1, %v304
    %v306 = vrot.slane %v297, %v305
    %309 = vmatprep.subr.mxu0 %v234
    %310 = vmatpush1.msra.mxu0 %v233
    %311 = vmatprep.subr.mxu0 %v236
    %312 = vmatpush1.msra.mxu0 %v235
    %313 = vmatprep.subr.mxu0 %v238
    %314 = vmatpush1.msra.mxu0 %v237
    %315 = vmatprep.subr.mxu0 %v240
    %316 = vmatpush1.msra.mxu0 %v239
    %317 = vmatprep.subr.mxu0 %v242
    %318 = vmatpush1.msra.mxu0 %v241
    %319 = vmatprep.subr.mxu0 %v244
    %320 = vmatpush1.msra.mxu0 %v243
    %321 = vmatprep.subr.mxu0 %v246
    %322 = vmatpush1.msra.mxu0 %v245
    %323 = vmatprep.subr.mxu0 %v248
    %324 = vmatpush1.msra.mxu0 %v247
    %325 = vmatprep.subr.mxu0 %v250
    %326 = vmatpush1.msra.mxu0 %v249
    %327 = vmatprep.subr.mxu0 %v252
    %328 = vmatpush1.msra.mxu0 %v251
    %329 = vmatprep.subr.mxu0 %v254
    %330 = vmatpush1.msra.mxu0 %v253
    %331 = vmatprep.subr.mxu0 %v256
    %332 = vmatpush1.msra.mxu0 %v255
    %333 = vmatprep.subr.mxu0 %v258
    %334 = vmatpush1.msra.mxu0 %v257
    %335 = vmatprep.subr.mxu0 %v260
    %336 = vmatpush1.msra.mxu0 %v259
    %337 = vmatprep.subr.mxu0 %v262
    %338 = vmatpush1.msra.mxu0 %v261
    %339 = vmatprep.subr.mxu0 %v264
    %340 = vmatpush1.msra.mxu0 %v263
    %341 = vmatprep.subr.mxu0 %v266
    %342 = vmatpush1.msra.mxu0 %v265
    %343 = vmatprep.subr.mxu0 %v268
    %344 = vmatpush1.msra.mxu0 %v267
    %345 = vmatprep.subr.mxu0 %v270
    %346 = vmatpush1.msra.mxu0 %v269
    %347 = vmatprep.subr.mxu0 %v272
    %348 = vmatpush1.msra.mxu0 %v271
    %349 = vmatprep.subr.mxu0 %v274
    %350 = vmatpush1.msra.mxu0 %v273
    %351 = vmatprep.subr.mxu0 %v276
    %352 = vmatpush1.msra.mxu0 %v275
    %353 = vmatprep.subr.mxu0 %v278
    %354 = vmatpush1.msra.mxu0 %v277
    %355 = vmatprep.subr.mxu0 %v280
    %356 = vmatpush1.msra.mxu0 %v279
    %357 = vmatprep.subr.mxu0 %v282
    %358 = vmatpush1.msra.mxu0 %v281
    %359 = vmatprep.subr.mxu0 %v284
    %360 = vmatpush1.msra.mxu0 %v283
    %361 = vmatprep.subr.mxu0 %v286
    %362 = vmatpush1.msra.mxu0 %v285
    %363 = vmatprep.subr.mxu0 %v288
    %364 = vmatpush1.msra.mxu0 %v287
    %365 = vmatprep.subr.mxu0 %v290
    %366 = vmatpush1.msra.mxu0 %v289
    %367 = vmatprep.subr.mxu0 %v292
    %368 = vmatpush1.msra.mxu0 %v291
    %369 = vmatprep.subr.mxu0 %v294
    %370 = vmatpush1.msra.mxu0 %v293
    %371 = vmatprep.subr.mxu0 %v296
    %372 = vmatpush1.msra.mxu0 %v295
    %373 = vmatprep.mubr.f32.mxu0 %v232
    %374 = vmatmul.mubr.f32.gmra.mrb[0].mxu0 %v231
    %v375 = vpop.f32.mrb[0].mxu0
    %v376 = vadd.f32 %v302, %v375
    %v377 = vpop.f32.mrb[0].mxu0
    %v378 = vadd.f32 %v306, %v377
    %379 = vdwg.mxu0
    %v380 = vmul.f32 %v376, 0.2
    %v381 = vmul.f32 %v378, 0.2
    %v382 = vmax.f32 %v376, %v380
    %v383 = vmax.f32 %v378, %v381
    %v384 = vld [vmem:[#allocation8] sm:$0xff]
    %v385 = vld [vmem:[#allocation8 + $0x8] sm:$0xff]
    %v386 = vld [vmem:[#allocation8 + $0x10] sm:$0xff]
    %v387 = vld [vmem:[#allocation8 + $0x18] sm:$0xff]
    %v388 = vld [vmem:[#allocation8 + $0x20] sm:$0xff]
    %v389 = vld [vmem:[#allocation8 + $0x28] sm:$0xff]
    %v390 = vld [vmem:[#allocation8 + $0x30] sm:$0xff]
    %v391 = vld [vmem:[#allocation8 + $0x38] sm:$0xff]
    %v392 = vld [vmem:[#allocation8 + $0x40] sm:$0xff]
    %v393 = vld [vmem:[#allocation8 + $0x48] sm:$0xff]
    %v394 = vld [vmem:[#allocation8 + $0x50] sm:$0xff]
    %v395 = vld [vmem:[#allocation8 + $0x58] sm:$0xff]
    %v396 = vld [vmem:[#allocation8 + $0x60] sm:$0xff]
    %v397 = vld [vmem:[#allocation8 + $0x68] sm:$0xff]
    %v398 = vld [vmem:[#allocation8 + $0x70] sm:$0xff]
    %v399 = vld [vmem:[#allocation8 + $0x78] sm:$0xff]
    %v400 = vld [vmem:[#allocation8 + $0x80] sm:$0xff]
    %v401 = vld [vmem:[#allocation8 + $0x88] sm:$0xff]
    %v402 = vld [vmem:[#allocation8 + $0x90] sm:$0xff]
    %v403 = vld [vmem:[#allocation8 + $0x98] sm:$0xff]
    %v404 = vld [vmem:[#allocation8 + $0xa0] sm:$0xff]
    %v405 = vld [vmem:[#allocation8 + $0xa8] sm:$0xff]
    %v406 = vld [vmem:[#allocation8 + $0xb0] sm:$0xff]
    %v407 = vld [vmem:[#allocation8 + $0xb8] sm:$0xff]
    %v408 = vld [vmem:[#allocation8 + $0xc0] sm:$0xff]
    %v409 = vld [vmem:[#allocation8 + $0xc8] sm:$0xff]
    %v410 = vld [vmem:[#allocation8 + $0xd0] sm:$0xff]
    %v411 = vld [vmem:[#allocation8 + $0xd8] sm:$0xff]
    %v412 = vld [vmem:[#allocation8 + $0xe0] sm:$0xff]
    %v413 = vld [vmem:[#allocation8 + $0xe8] sm:$0xff]
    %v414 = vld [vmem:[#allocation8 + $0xf0] sm:$0xff]
    %v415 = vld [vmem:[#allocation8 + $0xf8] sm:$0xff]
    %v416 = vld [vmem:[#allocation8 + $0x100] sm:$0xff]
    %v417 = vld [vmem:[#allocation8 + $0x108] sm:$0xff]
    %v418 = vld [vmem:[#allocation8 + $0x110] sm:$0xff]
    %v419 = vld [vmem:[#allocation8 + $0x118] sm:$0xff]
    %v420 = vld [vmem:[#allocation8 + $0x120] sm:$0xff]
    %v421 = vld [vmem:[#allocation8 + $0x128] sm:$0xff]
    %v422 = vld [vmem:[#allocation8 + $0x130] sm:$0xff]
    %v423 = vld [vmem:[#allocation8 + $0x138] sm:$0xff]
    %v424 = vld [vmem:[#allocation8 + $0x140] sm:$0xff]
    %v425 = vld [vmem:[#allocation8 + $0x148] sm:$0xff]
    %v426 = vld [vmem:[#allocation8 + $0x150] sm:$0xff]
    %v427 = vld [vmem:[#allocation8 + $0x158] sm:$0xff]
    %v428 = vld [vmem:[#allocation8 + $0x160] sm:$0xff]
    %v429 = vld [vmem:[#allocation8 + $0x168] sm:$0xff]
    %v430 = vld [vmem:[#allocation8 + $0x170] sm:$0xff]
    %v431 = vld [vmem:[#allocation8 + $0x178] sm:$0xff]
    %v432 = vld [vmem:[#allocation8 + $0x180] sm:$0xff]
    %v433 = vld [vmem:[#allocation8 + $0x188] sm:$0xff]
    %v434 = vld [vmem:[#allocation8 + $0x190] sm:$0xff]
    %v435 = vld [vmem:[#allocation8 + $0x198] sm:$0xff]
    %v436 = vld [vmem:[#allocation8 + $0x1a0] sm:$0xff]
    %v437 = vld [vmem:[#allocation8 + $0x1a8] sm:$0xff]
    %v438 = vld [vmem:[#allocation8 + $0x1b0] sm:$0xff]
    %v439 = vld [vmem:[#allocation8 + $0x1b8] sm:$0xff]
    %v440 = vld [vmem:[#allocation8 + $0x1c0] sm:$0xff]
    %v441 = vld [vmem:[#allocation8 + $0x1c8] sm:$0xff]
    %v442 = vld [vmem:[#allocation8 + $0x1d0] sm:$0xff]
    %v443 = vld [vmem:[#allocation8 + $0x1d8] sm:$0xff]
    %v444 = vld [vmem:[#allocation8 + $0x1e0] sm:$0xff]
    %v445 = vld [vmem:[#allocation8 + $0x1e8] sm:$0xff]
    %v446 = vld [vmem:[#allocation8 + $0x1f0] sm:$0xff]
    %v447 = vld [vmem:[#allocation8 + $0x1f8] sm:$0xff]
    %v448 = vld [vmem:[%s6] sm:$0x3]
    %v450 = vlaneseq
    %v451 = vshrl.u32 %v450, 7
    %v452 = vsub.s32 0, %v451
    %v453 = vrot.slane %v448, %v452
    %v454 = vlaneseq
    %v455 = vshrl.u32 %v454, 7
    %v456 = vsub.s32 1, %v455
    %v457 = vrot.slane %v448, %v456
    %460 = vmatprep.subr.mxu0 %v385
    %461 = vmatpush1.msra.mxu0 %v384
    %462 = vmatprep.subr.mxu0 %v387
    %463 = vmatpush1.msra.mxu0 %v386
    %464 = vmatprep.subr.mxu0 %v389
    %465 = vmatpush1.msra.mxu0 %v388
    %466 = vmatprep.subr.mxu0 %v391
    %467 = vmatpush1.msra.mxu0 %v390
    %468 = vmatprep.subr.mxu0 %v393
    %469 = vmatpush1.msra.mxu0 %v392
    %470 = vmatprep.subr.mxu0 %v395
    %471 = vmatpush1.msra.mxu0 %v394
    %472 = vmatprep.subr.mxu0 %v397
    %473 = vmatpush1.msra.mxu0 %v396
    %474 = vmatprep.subr.mxu0 %v399
    %475 = vmatpush1.msra.mxu0 %v398
    %476 = vmatprep.subr.mxu0 %v401
    %477 = vmatpush1.msra.mxu0 %v400
    %478 = vmatprep.subr.mxu0 %v403
    %479 = vmatpush1.msra.mxu0 %v402
    %480 = vmatprep.subr.mxu0 %v405
    %481 = vmatpush1.msra.mxu0 %v404
    %482 = vmatprep.subr.mxu0 %v407
    %483 = vmatpush1.msra.mxu0 %v406
    %484 = vmatprep.subr.mxu0 %v409
    %485 = vmatpush1.msra.mxu0 %v408
    %486 = vmatprep.subr.mxu0 %v411
    %487 = vmatpush1.msra.mxu0 %v410
    %488 = vmatprep.subr.mxu0 %v413
    %489 = vmatpush1.msra.mxu0 %v412
    %490 = vmatprep.subr.mxu0 %v415
    %491 = vmatpush1.msra.mxu0 %v414
    %492 = vmatprep.subr.mxu0 %v417
    %493 = vmatpush1.msra.mxu0 %v416
    %494 = vmatprep.subr.mxu0 %v419
    %495 = vmatpush1.msra.mxu0 %v418
    %496 = vmatprep.subr.mxu0 %v421
    %497 = vmatpush1.msra.mxu0 %v420
    %498 = vmatprep.subr.mxu0 %v423
    %499 = vmatpush1.msra.mxu0 %v422
    %500 = vmatprep.subr.mxu0 %v425
    %501 = vmatpush1.msra.mxu0 %v424
    %502 = vmatprep.subr.mxu0 %v427
    %503 = vmatpush1.msra.mxu0 %v426
    %504 = vmatprep.subr.mxu0 %v429
    %505 = vmatpush1.msra.mxu0 %v428
    %506 = vmatprep.subr.mxu0 %v431
    %507 = vmatpush1.msra.mxu0 %v430
    %508 = vmatprep.subr.mxu0 %v433
    %509 = vmatpush1.msra.mxu0 %v432
    %510 = vmatprep.subr.mxu0 %v435
    %511 = vmatpush1.msra.mxu0 %v434
    %512 = vmatprep.subr.mxu0 %v437
    %513 = vmatpush1.msra.mxu0 %v436
    %514 = vmatprep.subr.mxu0 %v439
    %515 = vmatpush1.msra.mxu0 %v438
    %516 = vmatprep.subr.mxu0 %v441
    %517 = vmatpush1.msra.mxu0 %v440
    %518 = vmatprep.subr.mxu0 %v443
    %519 = vmatpush1.msra.mxu0 %v442
    %520 = vmatprep.subr.mxu0 %v445
    %521 = vmatpush1.msra.mxu0 %v444
    %522 = vmatprep.subr.mxu0 %v447
    %523 = vmatpush1.msra.mxu0 %v446
    %524 = vmatprep.mubr.f32.mxu0 %v383
    %525 = vmatmul.mubr.f32.gmra.mrb[0].mxu0 %v382
    %v526 = vpop.f32.mrb[0].mxu0
    %v527 = vadd.f32 %v453, %v526
    %v528 = vpop.f32.mrb[0].mxu0
    %v529 = vadd.f32 %v457, %v528
    %530 = vdwg.mxu0
    %v531 = vmul.f32 %v527, 0.2
    %v532 = vmul.f32 %v529, 0.2
    %v533 = vmax.f32 %v527, %v531
    %v534 = vmax.f32 %v529, %v532
    %535 = vst [vmem:[#allocation10] sm:$0xff] %v533
    %536 = vst [vmem:[#allocation10 + $0x8] sm:$0xff] %v534
    // Predicated region
    $region46: #{tpu_custom_call.1} parent=1 // pred_check
      _
    $region47: #{tpu_custom_call.1} parent=1 // pred_check_branch
      %538 = sbr.rel (0) target = $region49
    $region48: #{tpu_custom_call.1} parent=1 // pred_region
      %s540 = ssub.s32 256, 256
      %541 = vsyncadd [#allocation4], %s540
      %s543 = sshll.u32 [#allocation10], 4
      %s544 = int_to_ptr.vmem [resolvable:$true] %s543
      %546 = dma.vmem_to_hbm [thread:$0]  %s544, 256, %s7, [#allocation4]
    $region49: #{tpu_custom_call.1} parent=1 // pred_fallthru
      _
    // Predicated region
    $region50: #{tpu_custom_call.1} parent=1 // pred_check
      _
    $region51: #{tpu_custom_call.1} parent=1 // pred_check_branch
      %548 = sbr.rel (0) target = $region53
    $region52: #{tpu_custom_call.1} parent=1 // pred_region
      %549 = dma.done [#allocation4], 256
    $region53: #{tpu_custom_call.1} parent=1 // pred_fallthru
      _
    %550 = vsyncpa [#allocation3], 1
    %551 = vsyncpa [#allocation6], 1
    %552 = vsyncpa [#allocation9], 1
    %553 = vsyncpa [#allocation4], 1

</llo_original>
